<compile_context>
chip_gen: v6e
topology: v6e:2x2x1
jax: 0.10.0
libtpu: 0.0.40
codegen_flags: <defaults>
</compile_context>

<pallas_src>
import functools

import jax
import jax.numpy as jnp
from jax import lax
from jax.experimental import pallas as pl
from jax.experimental.pallas import tpu as pltpu


# ---------------------------------------------------------------------------
# host-side helpers
# ---------------------------------------------------------------------------

def _vmem_limit() -> int:
    """Adaptive scoped-VMEM limit: ~70% of physical VMEM, capped at 100 MiB.

    v5e/v6e (128 MiB physical) -> ~90 MiB; v7x (64 MiB physical) -> ~45 MiB."""
    cap = 128 * 1024 * 1024
    try:
        info = pltpu.get_tpu_info()
        cap = int(getattr(info, "vmem_capacity_bytes", cap)) or cap
    except Exception:
        pass
    lim = int(0.7 * cap)
    return max(32 * 1024 * 1024, min(100 * 1024 * 1024, lim))


def _pick_lane_tile(hw: int, c: int, budget_bytes: int = 4 << 20) -> int:
    """Largest lane-dense (multiple-of-128) divisor of hw with a C*T f32 tile <= budget."""
    for t in (16384, 8192, 4096, 2048, 1024, 512, 256, 128):
        if hw % t == 0 and c * t * 4 <= budget_bytes:
            return t
    return hw  # awkward HW: single full-extent block (assumed to fit VMEM)


def _pick_channel_tile(d: int, l: int, ps: int, h: int, w: int,
                       budget_bytes: int = 12 << 20) -> int:
    """Channel tile for K2: multiple of 128 (lane-dense) dividing D, footprint-bounded."""
    for dt in (512, 384, 256, 128):
        if d % dt == 0:
            fp = (l * ps * ps * dt * 4        # prompt block (f32)
                  + ps * w * dt * 4           # width-pass scratch (f32)
                  + 2 * h * w * dt * 2)       # double-buffered bf16 output block
            if fp <= budget_bytes:
                return dt
    return d


def _pick_row_block(h: int, w: int, din: int, dout: int,
                    budget_bytes: int = 12 << 20, target_m: int = 2048) -> int:
    """Row block for K3 so the matmul M = Rh*W is large, subject to a VMEM budget."""
    best = 1
    for rh in range(1, h + 1):
        if h % rh:
            continue
        fp = ((rh + 2) * (w + 2) * din * 2    # halo band scratch (bf16)
              + 2 * rh * w * din * 2          # double-buffered bf16 input block
              + 3 * rh * w * dout * 4)        # f32 output block (x2) + accumulator
        if fp > budget_bytes:
            break
        best = rh
        if rh * w >= target_m:                # M big enough to amortise MXU overhead
            break
    return best


def _interp_indices(out_size: int, in_size: int):
    """PyTorch F.interpolate(mode='bilinear', align_corners=False) source taps."""
    src = (jnp.arange(out_size, dtype=jnp.float32) + 0.5) * (in_size / out_size) - 0.5
    src = jnp.maximum(src, 0.0)
    i0 = jnp.minimum(jnp.floor(src).astype(jnp.int32), in_size - 1)
    frac = src - i0.astype(jnp.float32)
    i1 = jnp.minimum(i0 + 1, in_size - 1)
    return i0, i1, frac


def _interp_matrix(out_size: int, in_size: int) -> jnp.ndarray:
    """(out_size, in_size) dense bilinear interpolation operator (<= 2 nnz per row)."""
    i0, i1, f = _interp_indices(out_size, in_size)
    oh0 = jax.nn.one_hot(i0, in_size, dtype=jnp.float32)
    oh1 = jax.nn.one_hot(i1, in_size, dtype=jnp.float32)
    return oh0 * (1.0 - f)[:, None] + oh1 * f[:, None]


# ---------------------------------------------------------------------------
# Kernel 1: global average pool (streamed over HW) + Linear + softmax
# ---------------------------------------------------------------------------

def _pool_fc_softmax_kernel(x_ref, wl_ref, bl_ref, o_ref, acc_ref, *, inv_hw):
    # x_ref: (1, C, T)  wl_ref: (L, C)  bl_ref: (L, 1)  o_ref: (1, L, 1)  acc_ref: (C, 128)
    t = pl.program_id(1)
    T = x_ref.shape[2]
    lane_chunks = T // 128 if T % 128 == 0 else 0

    @pl.when(t == 0)
    def _():
        acc_ref[...] = jnp.zeros_like(acc_ref)

    if lane_chunks > 0:
        # VPU-only per-tile accumulation over 128-lane slices (no per-tile XLU reduce).
        s = x_ref[0, :, 0:128].astype(jnp.float32)
        for k in range(1, lane_chunks):
            s = s + x_ref[0, :, k * 128:(k + 1) * 128].astype(jnp.float32)
        acc_ref[...] += s
    else:
        # Awkward (non multiple-of-128) spatial extent: single full-extent tile.
        acc_ref[:, 0:1] += jnp.sum(x_ref[0].astype(jnp.float32), axis=1, keepdims=True)

    @pl.when(t == pl.num_programs(1) - 1)
    def _():
        emb = jnp.sum(acc_ref[...], axis=1, keepdims=True) * inv_hw      # (C, 1), one XLU reduce
        logits = jnp.dot(wl_ref[...], emb,
                         preferred_element_type=jnp.float32) + bl_ref[...]   # (L, 1)
        m = jnp.max(logits, axis=0, keepdims=True)
        e = jnp.exp(logits - m)
        o_ref[0] = (e / jnp.sum(e, axis=0, keepdims=True)).astype(o_ref.dtype)


def _prompt_weights(x3, lin_w, lin_b):
    B, C, HW = x3.shape
    L = lin_w.shape[0]
    T = _pick_lane_tile(HW, C)
    n_t = HW // T
    out = pl.pallas_call(
        functools.partial(_pool_fc_softmax_kernel, inv_hw=1.0 / float(HW)),
        out_shape=jax.ShapeDtypeStruct((B, L, 1), jnp.float32),
        grid_spec=pltpu.PrefetchScalarGridSpec(
            num_scalar_prefetch=0,
            grid=(B, n_t),
            in_specs=[
                pl.BlockSpec((1, C, T), lambda b, t: (b, 0, t)),
                pl.BlockSpec((L, C), lambda b, t: (0, 0)),
                pl.BlockSpec((L, 1), lambda b, t: (0, 0)),
            ],
            out_specs=pl.BlockSpec((1, L, 1), lambda b, t: (b, 0, 0)),
            scratch_shapes=[pltpu.VMEM((C, 128), jnp.float32)],
        ),
        compiler_params=pltpu.CompilerParams(
            dimension_semantics=("parallel", "arbitrary"),
            vmem_limit_bytes=_vmem_limit(),
        ),
    )(x3, lin_w, lin_b.reshape(L, 1))
    return out.reshape(B, L)


# ---------------------------------------------------------------------------
# Kernel 2: weighted prompt combine + separable bilinear upsample (channels-last, bf16)
# ---------------------------------------------------------------------------

def _combine_upsample_kernel(w_ref, hi0_ref, hi1_ref, hf_ref, p_ref, aw_ref,
                             o_ref, tmp_ref):
    # w_ref: (B, L) SMEM   hi0/hi1: (H,) int32 SMEM   hf: (H,) f32 SMEM
    # p_ref: (L, Ps, Ps, Dt)   aw_ref: (W, Ps) bf16   o_ref: (1, H, W, Dt) bf16
    # tmp_ref: (Ps, W, Dt) f32 scratch
    b = pl.program_id(1)
    L, Ps = p_ref.shape[0], p_ref.shape[1]
    H = o_ref.shape[1]

    # Width pass: per source row, combine over L (VPU) then one bf16 MXU matmul.
    for i in range(Ps):
        comb_i = w_ref[b, 0] * p_ref[0, i].astype(jnp.float32)            # (Ps, Dt)
        for l in range(1, L):
            comb_i = comb_i + w_ref[b, l] * p_ref[l, i].astype(jnp.float32)
        tmp_ref[i] = jnp.dot(aw_ref[...], comb_i.astype(jnp.bfloat16),
                             preferred_element_type=jnp.float32)          # (W, Dt)

    # Height pass: exact 2-tap bilinear blend (VPU), indices/fractions from SMEM.
    def hrow(h, carry):
        f = hf_ref[h]
        row = (1.0 - f) * tmp_ref[hi0_ref[h]] + f * tmp_ref[hi1_ref[h]]   # (W, Dt) f32
        o_ref[0, h] = row.astype(o_ref.dtype)
        return carry

    lax.fori_loop(0, H, hrow, 0)


def _combine_and_upsample(weights, hi0, hi1, hf, p_t, a_w_bf16, H, W):
    B, L = weights.shape
    _, Ps, _, D = p_t.shape
    Dt = _pick_channel_tile(D, L, Ps, H, W)
    n_d = D // Dt
    return pl.pallas_call(
        _combine_upsample_kernel,
        out_shape=jax.ShapeDtypeStruct((B, H, W, D), jnp.bfloat16),
        grid_spec=pltpu.PrefetchScalarGridSpec(
            num_scalar_prefetch=0,
            grid=(n_d, B),   # d OUTER: the (L,Ps,Ps,Dt) prompt tile is reused across b
            in_specs=[
                pl.BlockSpec(memory_space=pltpu.MemorySpace.SMEM),   # weights (B, L)
                pl.BlockSpec(memory_space=pltpu.MemorySpace.SMEM),   # hi0 (H,)
                pl.BlockSpec(memory_space=pltpu.MemorySpace.SMEM),   # hi1 (H,)
                pl.BlockSpec(memory_space=pltpu.MemorySpace.SMEM),   # hf  (H,)
                pl.BlockSpec((L, Ps, Ps, Dt), lambda d, b: (0, 0, 0, d)),
                pl.BlockSpec((W, Ps), lambda d, b: (0, 0)),
            ],
            out_specs=pl.BlockSpec((1, H, W, Dt), lambda d, b: (b, 0, 0, d)),
            scratch_shapes=[pltpu.VMEM((Ps, W, Dt), jnp.float32)],
        ),
        compiler_params=pltpu.CompilerParams(
            dimension_semantics=("parallel", "parallel"),
            vmem_limit_bytes=_vmem_limit(),
        ),
    )(weights, hi0, hi1, hf, p_t, a_w_bf16)


# ---------------------------------------------------------------------------
# Kernel 3: 3x3 conv, padding=1, no bias (NHWC, fused halo, row-batched bf16 matmuls)
# ---------------------------------------------------------------------------

def _conv3x3_kernel(x_c_ref, x_top_ref, x_bot_ref, w_ref, o_ref, band_ref):
    # x_c_ref: (1, Rh, W, Din)  x_top/x_bot: (1, 1, W, Din)  w_ref: (9, Din, Dout)
    # o_ref: (1, Rh, W, Dout)   band_ref: (Rh+2, W+2, Din) bf16 scratch
    r = pl.program_id(1)
    last_r = pl.num_programs(1) - 1
    _, Rh, W, Din = x_c_ref.shape
    Dout = o_ref.shape[3]

    # Assemble the zero-padded halo band in VMEM (padding fused, no HBM round-trip).
    band_ref[:, 0:1, :] = jnp.zeros((Rh + 2, 1, Din), band_ref.dtype)       # left halo col
    band_ref[:, W + 1:W + 2, :] = jnp.zeros((Rh + 2, 1, Din), band_ref.dtype)  # right halo col
    band_ref[1:Rh + 1, 1:W + 1, :] = x_c_ref[0].astype(band_ref.dtype)      # center rows

    @pl.when(r == 0)
    def _():
        band_ref[0:1, 1:W + 1, :] = jnp.zeros((1, W, Din), band_ref.dtype)

    @pl.when(r > 0)
    def _():
        band_ref[0:1, 1:W + 1, :] = x_top_ref[0].astype(band_ref.dtype)

    @pl.when(r == last_r)
    def _():
        band_ref[Rh + 1:Rh + 2, 1:W + 1, :] = jnp.zeros((1, W, Din), band_ref.dtype)

    @pl.when(r < last_r)
    def _():
        band_ref[Rh + 1:Rh + 2, 1:W + 1, :] = x_bot_ref[0].astype(band_ref.dtype)

    # 9 row-batched bf16 matmuls (M = Rh*W, K = Din), straight-line f32 accumulate chain.
    acc = jnp.zeros((Rh * W, Dout), jnp.float32)
    for dy in range(3):
        for dx in range(3):
            patch = band_ref[dy:dy + Rh, dx:dx + W, :].reshape(Rh * W, Din)
            acc = acc + jnp.dot(patch, w_ref[dy * 3 + dx],
                                preferred_element_type=jnp.float32)
    o_ref[0] = acc.reshape(Rh, W, Dout).astype(o_ref.dtype)


def _conv3x3(up, w9, H, W):
    B, _, _, Din = up.shape
    Dout = w9.shape[2]
    Rh = _pick_row_block(H, W, Din, Dout)
    n_r = H // Rh
    return pl.pallas_call(
        _conv3x3_kernel,
        out_shape=jax.ShapeDtypeStruct((B, H, W, Dout), jnp.float32),
        grid_spec=pltpu.PrefetchScalarGridSpec(
            num_scalar_prefetch=0,
            grid=(B, n_r),
            in_specs=[
                # center row band
                pl.BlockSpec((1, Rh, W, Din), lambda b, r: (b, r, 0, 0)),
                # 1-row halos (row index clamped; zeroed in-kernel at boundaries)
                pl.BlockSpec((1, 1, W, Din),
                             lambda b, r: (b, jnp.maximum(r * Rh - 1, 0), 0, 0)),
                pl.BlockSpec((1, 1, W, Din),
                             lambda b, r: (b, jnp.minimum((r + 1) * Rh, H - 1), 0, 0)),
                pl.BlockSpec((9, Din, Dout), lambda b, r: (0, 0, 0)),
            ],
            out_specs=pl.BlockSpec((1, Rh, W, Dout), lambda b, r: (b, r, 0, 0)),
            scratch_shapes=[pltpu.VMEM((Rh + 2, W + 2, Din), jnp.bfloat16)],
        ),
        compiler_params=pltpu.CompilerParams(
            dimension_semantics=("parallel", "arbitrary"),
            vmem_limit_bytes=_vmem_limit(),
        ),
    )(up, up, up, w9)


# ---------------------------------------------------------------------------
# full forward
# ---------------------------------------------------------------------------

def prompt_block_forward(x, prompt_param, lin_w, lin_b, conv_w):
    """x: (B, C, H, W) NCHW.  prompt_param: (1, L, D, Ps, Ps).  lin_w: (L, C).
    lin_b: (L,).  conv_w: (D, D, 3, 3) (PyTorch OIHW).  Returns (B, D, H, W)."""
    B, C, H, W = x.shape
    _, L, D, Ps, _ = prompt_param.shape

    # 1) pool + linear + softmax -> per-sample prompt weights (B, L)
    x3 = x.reshape(B, C, H * W)                              # lane-dense spatial axis
    weights = _prompt_weights(x3, lin_w, lin_b)

    # 2) weighted prompt combine + SEPARABLE bilinear upsample (align_corners=False)
    a_w = _interp_matrix(W, Ps).astype(jnp.bfloat16)         # width operator (W, Ps)
    hi0, hi1, hf = _interp_indices(H, Ps)                    # height taps (H,)
    p_t = prompt_param[0].transpose(0, 2, 3, 1)              # (L, Ps, Ps, D) channels-last
    up = _combine_and_upsample(weights, hi0, hi1, hf, p_t, a_w, H, W)   # (B,H,W,D) bf16

    # 3) 3x3 conv, padding=1, bias=False (padding fused in-kernel, NHWC)
    w9 = jnp.transpose(conv_w, (2, 3, 1, 0)).reshape(9, D, D).astype(jnp.bfloat16)
    out_nhwc = _conv3x3(up, w9, H, W)                        # (B, H, W, D) f32
    return jnp.transpose(out_nhwc, (0, 3, 1, 2))             # back to NCHW


# ---------------------------------------------------------------------------
# plain-JAX reference (matches the PyTorch module semantics)
# ---------------------------------------------------------------------------

def _bilinear_resize_ref(x, H, W):
    B, D, Ph, Pw = x.shape
    r0, r1, fr = _interp_indices(H, Ph)
    c0, c1, fc = _interp_indices(W, Pw)
    rows = (x[:, :, r0, :] * (1.0 - fr)[None, None, :, None]
            + x[:, :, r1, :] * fr[None, None, :, None])                 # (B, D, H, Pw)
    out = (rows[:, :, :, c0] * (1.0 - fc)[None, None, None, :]
           + rows[:, :, :, c1] * fc[None, None, None, :])               # (B, D, H, W)
    return out


def _reference(x, prompt_param, lin_w, lin_b, conv_w):
    B, C, H, W = x.shape
    emb = x.mean(axis=(2, 3))                                           # (B, C)
    pw = jax.nn.softmax(emb @ lin_w.T + lin_b, axis=1)                  # (B, L)
    prompt = jnp.einsum("bl,ldpq->bdpq", pw, prompt_param[0])           # (B, D, Ps, Ps)
    prompt = _bilinear_resize_ref(prompt, H, W)                         # (B, D, H, W)
    out = lax.conv_general_dilated(
        prompt, conv_w, window_strides=(1, 1), padding=((1, 1), (1, 1)),
        dimension_numbers=("NCHW", "OIHW", "NCHW"))
    return out


if __name__ == "__main__":
    # Small shapes consistent with the module defaults (scaled down);
    # chosen so K3 uses 2 row blocks (exercises the halo path).
    B, C, H, W = 2, 32, 64, 64          # lin_dim = 32
    L, D, Ps = 5, 32, 8                 # prompt_len, prompt_dim, prompt_size

    key = jax.random.PRNGKey(0)
    kx, kp, kw, kb, kc = jax.random.split(key, 5)

    x = jax.random.normal(kx, (B, C, H, W), dtype=jnp.float32)
    prompt_param = jax.random.uniform(kp, (1, L, D, Ps, Ps), dtype=jnp.float32)
    lin_w = jax.random.normal(kw, (L, C), dtype=jnp.float32) * 0.1
    lin_b = jax.random.normal(kb, (L,), dtype=jnp.float32) * 0.1
    conv_w = jax.random.normal(kc, (D, D, 3, 3), dtype=jnp.float32) * 0.05

    out = prompt_block_forward(x, prompt_param, lin_w, lin_b, conv_w)
    jax.block_until_ready(out)

    ref = _reference(x, prompt_param, lin_w, lin_b, conv_w)
    assert out.shape == (B, D, H, W), f"bad output shape {out.shape}"
    # bf16 MXU staging (per perf review) -> looser tolerance than pure f32.
    assert jnp.allclose(out, ref, atol=5e-2, rtol=5e-2), (
        "mismatch vs reference, max abs err = "
        f"{float(jnp.max(jnp.abs(out - ref)))}")

    print("KERNEL_OK")
</pallas_src>

<mosaic_0001>
module attributes {stable_mosaic.version = 11 : i64} {
  func.func @_pool_fc_softmax_kernel(%arg0: i32, %arg1: i32, %arg2: memref<1x32x4096xf32, #tpu.memory_space<vmem>>, %arg3: memref<5x32xf32, #tpu.memory_space<vmem>>, %arg4: memref<5x1xf32, #tpu.memory_space<vmem>>, %arg5: memref<1x5x1xf32, #tpu.memory_space<vmem>>, %arg6: memref<32x128xf32, #tpu.memory_space<vmem>>) attributes {dimension_semantics = [#tpu.dimension_semantics<parallel>, #tpu.dimension_semantics<arbitrary>], iteration_bounds = array<i64: 2, 1>, scalar_prefetch = 0 : i64, scratch_operands = 1 : i64, tpu.core_type = #tpu.core_type<tc>, window_params = [{transform_indices = @transform_0, window_bounds = array<i64: 1, 32, 4096>}, {pipeline_mode = #tpu.pipeline_mode<synchronous>, transform_indices = @transform_1, window_bounds = array<i64: 5, 32>}, {pipeline_mode = #tpu.pipeline_mode<synchronous>, transform_indices = @transform_2, window_bounds = array<i64: 5, 1>}, {transform_indices = @transform_3, window_bounds = array<i64: 1, 5, 1>}]} {
    %c0_i32 = arith.constant 0 : i32
    %0 = arith.cmpi eq, %arg1, %c0_i32 : i32
    %1 = arith.extui %0 : i1 to i32
    %c0_i32_0 = arith.constant 0 : i32
    %2 = arith.cmpi ne, %1, %c0_i32_0 : i32
    scf.if %2 {
      %cst = arith.constant 0.000000e+00 : f32
      %104 = vector.broadcast %cst : f32 to vector<32x128xf32>
      %c0_71 = arith.constant 0 : index
      %c0_72 = arith.constant 0 : index
      %105 = vector.load %arg6[%c0_71, %c0_72] : memref<32x128xf32, #tpu.memory_space<vmem>>, vector<32x128xf32>
      tpu.vector_store %arg6[%c0_71, %c0_72], %104 {strides = array<i32>} : memref<32x128xf32, #tpu.memory_space<vmem>>, vector<32x128xf32>,
    } else {
    }
    %c0 = arith.constant 0 : index
    %c0_1 = arith.constant 0 : index
    %c0_2 = arith.constant 0 : index
    %3 = vector.load %arg2[%c0, %c0_1, %c0_2] : memref<1x32x4096xf32, #tpu.memory_space<vmem>>, vector<1x32x128xf32>
    %4 = vector.shape_cast %3 : vector<1x32x128xf32> to vector<32x128xf32>
    %c0_3 = arith.constant 0 : index
    %c0_4 = arith.constant 0 : index
    %c128 = arith.constant 128 : index
    %5 = vector.load %arg2[%c0_3, %c0_4, %c128] : memref<1x32x4096xf32, #tpu.memory_space<vmem>>, vector<1x32x128xf32>
    %6 = vector.shape_cast %5 : vector<1x32x128xf32> to vector<32x128xf32>
    %7 = arith.addf %4, %6 : vector<32x128xf32>
    %c0_5 = arith.constant 0 : index
    %c0_6 = arith.constant 0 : index
    %c256 = arith.constant 256 : index
    %8 = vector.load %arg2[%c0_5, %c0_6, %c256] : memref<1x32x4096xf32, #tpu.memory_space<vmem>>, vector<1x32x128xf32>
    %9 = vector.shape_cast %8 : vector<1x32x128xf32> to vector<32x128xf32>
    %10 = arith.addf %7, %9 : vector<32x128xf32>
    %c0_7 = arith.constant 0 : index
    %c0_8 = arith.constant 0 : index
    %c384 = arith.constant 384 : index
    %11 = vector.load %arg2[%c0_7, %c0_8, %c384] : memref<1x32x4096xf32, #tpu.memory_space<vmem>>, vector<1x32x128xf32>
    %12 = vector.shape_cast %11 : vector<1x32x128xf32> to vector<32x128xf32>
    %13 = arith.addf %10, %12 : vector<32x128xf32>
    %c0_9 = arith.constant 0 : index
    %c0_10 = arith.constant 0 : index
    %c512 = arith.constant 512 : index
    %14 = vector.load %arg2[%c0_9, %c0_10, %c512] : memref<1x32x4096xf32, #tpu.memory_space<vmem>>, vector<1x32x128xf32>
    %15 = vector.shape_cast %14 : vector<1x32x128xf32> to vector<32x128xf32>
    %16 = arith.addf %13, %15 : vector<32x128xf32>
    %c0_11 = arith.constant 0 : index
    %c0_12 = arith.constant 0 : index
    %c640 = arith.constant 640 : index
    %17 = vector.load %arg2[%c0_11, %c0_12, %c640] : memref<1x32x4096xf32, #tpu.memory_space<vmem>>, vector<1x32x128xf32>
    %18 = vector.shape_cast %17 : vector<1x32x128xf32> to vector<32x128xf32>
    %19 = arith.addf %16, %18 : vector<32x128xf32>
    %c0_13 = arith.constant 0 : index
    %c0_14 = arith.constant 0 : index
    %c768 = arith.constant 768 : index
    %20 = vector.load %arg2[%c0_13, %c0_14, %c768] : memref<1x32x4096xf32, #tpu.memory_space<vmem>>, vector<1x32x128xf32>
    %21 = vector.shape_cast %20 : vector<1x32x128xf32> to vector<32x128xf32>
    %22 = arith.addf %19, %21 : vector<32x128xf32>
    %c0_15 = arith.constant 0 : index
    %c0_16 = arith.constant 0 : index
    %c896 = arith.constant 896 : index
    %23 = vector.load %arg2[%c0_15, %c0_16, %c896] : memref<1x32x4096xf32, #tpu.memory_space<vmem>>, vector<1x32x128xf32>
    %24 = vector.shape_cast %23 : vector<1x32x128xf32> to vector<32x128xf32>
    %25 = arith.addf %22, %24 : vector<32x128xf32>
    %c0_17 = arith.constant 0 : index
    %c0_18 = arith.constant 0 : index
    %c1024 = arith.constant 1024 : index
    %26 = vector.load %arg2[%c0_17, %c0_18, %c1024] : memref<1x32x4096xf32, #tpu.memory_space<vmem>>, vector<1x32x128xf32>
    %27 = vector.shape_cast %26 : vector<1x32x128xf32> to vector<32x128xf32>
    %28 = arith.addf %25, %27 : vector<32x128xf32>
    %c0_19 = arith.constant 0 : index
    %c0_20 = arith.constant 0 : index
    %c1152 = arith.constant 1152 : index
    %29 = vector.load %arg2[%c0_19, %c0_20, %c1152] : memref<1x32x4096xf32, #tpu.memory_space<vmem>>, vector<1x32x128xf32>
    %30 = vector.shape_cast %29 : vector<1x32x128xf32> to vector<32x128xf32>
    %31 = arith.addf %28, %30 : vector<32x128xf32>
    %c0_21 = arith.constant 0 : index
    %c0_22 = arith.constant 0 : index
    %c1280 = arith.constant 1280 : index
    %32 = vector.load %arg2[%c0_21, %c0_22, %c1280] : memref<1x32x4096xf32, #tpu.memory_space<vmem>>, vector<1x32x128xf32>
    %33 = vector.shape_cast %32 : vector<1x32x128xf32> to vector<32x128xf32>
    %34 = arith.addf %31, %33 : vector<32x128xf32>
    %c0_23 = arith.constant 0 : index
    %c0_24 = arith.constant 0 : index
    %c1408 = arith.constant 1408 : index
    %35 = vector.load %arg2[%c0_23, %c0_24, %c1408] : memref<1x32x4096xf32, #tpu.memory_space<vmem>>, vector<1x32x128xf32>
    %36 = vector.shape_cast %35 : vector<1x32x128xf32> to vector<32x128xf32>
    %37 = arith.addf %34, %36 : vector<32x128xf32>
    %c0_25 = arith.constant 0 : index
    %c0_26 = arith.constant 0 : index
    %c1536 = arith.constant 1536 : index
    %38 = vector.load %arg2[%c0_25, %c0_26, %c1536] : memref<1x32x4096xf32, #tpu.memory_space<vmem>>, vector<1x32x128xf32>
    %39 = vector.shape_cast %38 : vector<1x32x128xf32> to vector<32x128xf32>
    %40 = arith.addf %37, %39 : vector<32x128xf32>
    %c0_27 = arith.constant 0 : index
    %c0_28 = arith.constant 0 : index
    %c1664 = arith.constant 1664 : index
    %41 = vector.load %arg2[%c0_27, %c0_28, %c1664] : memref<1x32x4096xf32, #tpu.memory_space<vmem>>, vector<1x32x128xf32>
    %42 = vector.shape_cast %41 : vector<1x32x128xf32> to vector<32x128xf32>
    %43 = arith.addf %40, %42 : vector<32x128xf32>
    %c0_29 = arith.constant 0 : index
    %c0_30 = arith.constant 0 : index
    %c1792 = arith.constant 1792 : index
    %44 = vector.load %arg2[%c0_29, %c0_30, %c1792] : memref<1x32x4096xf32, #tpu.memory_space<vmem>>, vector<1x32x128xf32>
    %45 = vector.shape_cast %44 : vector<1x32x128xf32> to vector<32x128xf32>
    %46 = arith.addf %43, %45 : vector<32x128xf32>
    %c0_31 = arith.constant 0 : index
    %c0_32 = arith.constant 0 : index
    %c1920 = arith.constant 1920 : index
    %47 = vector.load %arg2[%c0_31, %c0_32, %c1920] : memref<1x32x4096xf32, #tpu.memory_space<vmem>>, vector<1x32x128xf32>
    %48 = vector.shape_cast %47 : vector<1x32x128xf32> to vector<32x128xf32>
    %49 = arith.addf %46, %48 : vector<32x128xf32>
    %c0_33 = arith.constant 0 : index
    %c0_34 = arith.constant 0 : index
    %c2048 = arith.constant 2048 : index
    %50 = vector.load %arg2[%c0_33, %c0_34, %c2048] : memref<1x32x4096xf32, #tpu.memory_space<vmem>>, vector<1x32x128xf32>
    %51 = vector.shape_cast %50 : vector<1x32x128xf32> to vector<32x128xf32>
    %52 = arith.addf %49, %51 : vector<32x128xf32>
    %c0_35 = arith.constant 0 : index
    %c0_36 = arith.constant 0 : index
    %c2176 = arith.constant 2176 : index
    %53 = vector.load %arg2[%c0_35, %c0_36, %c2176] : memref<1x32x4096xf32, #tpu.memory_space<vmem>>, vector<1x32x128xf32>
    %54 = vector.shape_cast %53 : vector<1x32x128xf32> to vector<32x128xf32>
    %55 = arith.addf %52, %54 : vector<32x128xf32>
    %c0_37 = arith.constant 0 : index
    %c0_38 = arith.constant 0 : index
    %c2304 = arith.constant 2304 : index
    %56 = vector.load %arg2[%c0_37, %c0_38, %c2304] : memref<1x32x4096xf32, #tpu.memory_space<vmem>>, vector<1x32x128xf32>
    %57 = vector.shape_cast %56 : vector<1x32x128xf32> to vector<32x128xf32>
    %58 = arith.addf %55, %57 : vector<32x128xf32>
    %c0_39 = arith.constant 0 : index
    %c0_40 = arith.constant 0 : index
    %c2432 = arith.constant 2432 : index
    %59 = vector.load %arg2[%c0_39, %c0_40, %c2432] : memref<1x32x4096xf32, #tpu.memory_space<vmem>>, vector<1x32x128xf32>
    %60 = vector.shape_cast %59 : vector<1x32x128xf32> to vector<32x128xf32>
    %61 = arith.addf %58, %60 : vector<32x128xf32>
    %c0_41 = arith.constant 0 : index
    %c0_42 = arith.constant 0 : index
    %c2560 = arith.constant 2560 : index
    %62 = vector.load %arg2[%c0_41, %c0_42, %c2560] : memref<1x32x4096xf32, #tpu.memory_space<vmem>>, vector<1x32x128xf32>
    %63 = vector.shape_cast %62 : vector<1x32x128xf32> to vector<32x128xf32>
    %64 = arith.addf %61, %63 : vector<32x128xf32>
    %c0_43 = arith.constant 0 : index
    %c0_44 = arith.constant 0 : index
    %c2688 = arith.constant 2688 : index
    %65 = vector.load %arg2[%c0_43, %c0_44, %c2688] : memref<1x32x4096xf32, #tpu.memory_space<vmem>>, vector<1x32x128xf32>
    %66 = vector.shape_cast %65 : vector<1x32x128xf32> to vector<32x128xf32>
    %67 = arith.addf %64, %66 : vector<32x128xf32>
    %c0_45 = arith.constant 0 : index
    %c0_46 = arith.constant 0 : index
    %c2816 = arith.constant 2816 : index
    %68 = vector.load %arg2[%c0_45, %c0_46, %c2816] : memref<1x32x4096xf32, #tpu.memory_space<vmem>>, vector<1x32x128xf32>
    %69 = vector.shape_cast %68 : vector<1x32x128xf32> to vector<32x128xf32>
    %70 = arith.addf %67, %69 : vector<32x128xf32>
    %c0_47 = arith.constant 0 : index
    %c0_48 = arith.constant 0 : index
    %c2944 = arith.constant 2944 : index
    %71 = vector.load %arg2[%c0_47, %c0_48, %c2944] : memref<1x32x4096xf32, #tpu.memory_space<vmem>>, vector<1x32x128xf32>
    %72 = vector.shape_cast %71 : vector<1x32x128xf32> to vector<32x128xf32>
    %73 = arith.addf %70, %72 : vector<32x128xf32>
    %c0_49 = arith.constant 0 : index
    %c0_50 = arith.constant 0 : index
    %c3072 = arith.constant 3072 : index
    %74 = vector.load %arg2[%c0_49, %c0_50, %c3072] : memref<1x32x4096xf32, #tpu.memory_space<vmem>>, vector<1x32x128xf32>
    %75 = vector.shape_cast %74 : vector<1x32x128xf32> to vector<32x128xf32>
    %76 = arith.addf %73, %75 : vector<32x128xf32>
    %c0_51 = arith.constant 0 : index
    %c0_52 = arith.constant 0 : index
    %c3200 = arith.constant 3200 : index
    %77 = vector.load %arg2[%c0_51, %c0_52, %c3200] : memref<1x32x4096xf32, #tpu.memory_space<vmem>>, vector<1x32x128xf32>
    %78 = vector.shape_cast %77 : vector<1x32x128xf32> to vector<32x128xf32>
    %79 = arith.addf %76, %78 : vector<32x128xf32>
    %c0_53 = arith.constant 0 : index
    %c0_54 = arith.constant 0 : index
    %c3328 = arith.constant 3328 : index
    %80 = vector.load %arg2[%c0_53, %c0_54, %c3328] : memref<1x32x4096xf32, #tpu.memory_space<vmem>>, vector<1x32x128xf32>
    %81 = vector.shape_cast %80 : vector<1x32x128xf32> to vector<32x128xf32>
    %82 = arith.addf %79, %81 : vector<32x128xf32>
    %c0_55 = arith.constant 0 : index
    %c0_56 = arith.constant 0 : index
    %c3456 = arith.constant 3456 : index
    %83 = vector.load %arg2[%c0_55, %c0_56, %c3456] : memref<1x32x4096xf32, #tpu.memory_space<vmem>>, vector<1x32x128xf32>
    %84 = vector.shape_cast %83 : vector<1x32x128xf32> to vector<32x128xf32>
    %85 = arith.addf %82, %84 : vector<32x128xf32>
    %c0_57 = arith.constant 0 : index
    %c0_58 = arith.constant 0 : index
    %c3584 = arith.constant 3584 : index
    %86 = vector.load %arg2[%c0_57, %c0_58, %c3584] : memref<1x32x4096xf32, #tpu.memory_space<vmem>>, vector<1x32x128xf32>
    %87 = vector.shape_cast %86 : vector<1x32x128xf32> to vector<32x128xf32>
    %88 = arith.addf %85, %87 : vector<32x128xf32>
    %c0_59 = arith.constant 0 : index
    %c0_60 = arith.constant 0 : index
    %c3712 = arith.constant 3712 : index
    %89 = vector.load %arg2[%c0_59, %c0_60, %c3712] : memref<1x32x4096xf32, #tpu.memory_space<vmem>>, vector<1x32x128xf32>
    %90 = vector.shape_cast %89 : vector<1x32x128xf32> to vector<32x128xf32>
    %91 = arith.addf %88, %90 : vector<32x128xf32>
    %c0_61 = arith.constant 0 : index
    %c0_62 = arith.constant 0 : index
    %c3840 = arith.constant 3840 : index
    %92 = vector.load %arg2[%c0_61, %c0_62, %c3840] : memref<1x32x4096xf32, #tpu.memory_space<vmem>>, vector<1x32x128xf32>
    %93 = vector.shape_cast %92 : vector<1x32x128xf32> to vector<32x128xf32>
    %94 = arith.addf %91, %93 : vector<32x128xf32>
    %c0_63 = arith.constant 0 : index
    %c0_64 = arith.constant 0 : index
    %c3968 = arith.constant 3968 : index
    %95 = vector.load %arg2[%c0_63, %c0_64, %c3968] : memref<1x32x4096xf32, #tpu.memory_space<vmem>>, vector<1x32x128xf32>
    %96 = vector.shape_cast %95 : vector<1x32x128xf32> to vector<32x128xf32>
    %97 = arith.addf %94, %96 : vector<32x128xf32>
    %c0_65 = arith.constant 0 : index
    %c0_66 = arith.constant 0 : index
    %98 = vector.load %arg6[%c0_65, %c0_66] : memref<32x128xf32, #tpu.memory_space<vmem>>, vector<32x128xf32>
    %99 = arith.addf %98, %97 : vector<32x128xf32>
    %c0_67 = arith.constant 0 : index
    %c0_68 = arith.constant 0 : index
    %100 = vector.load %arg6[%c0_67, %c0_68] : memref<32x128xf32, #tpu.memory_space<vmem>>, vector<32x128xf32>
    tpu.vector_store %arg6[%c0_67, %c0_68], %99 {strides = array<i32>} : memref<32x128xf32, #tpu.memory_space<vmem>>, vector<32x128xf32>,
    %c0_i32_69 = arith.constant 0 : i32
    %101 = arith.cmpi eq, %arg1, %c0_i32_69 : i32
    %102 = arith.extui %101 : i1 to i32
    %c0_i32_70 = arith.constant 0 : i32
    %103 = arith.cmpi ne, %102, %c0_i32_70 : i32
    scf.if %103 {
      %c0_71 = arith.constant 0 : index
      %c0_72 = arith.constant 0 : index
      %104 = vector.load %arg6[%c0_71, %c0_72] : memref<32x128xf32, #tpu.memory_space<vmem>>, vector<32x128xf32>
      %cst = arith.constant dense<0.000000e+00> : vector<32xf32>
      %105 = vector.multi_reduction <add>, %104, %cst [1] : vector<32x128xf32> to vector<32xf32>
      %106 = vector.shape_cast %105 : vector<32xf32> to vector<32x1xf32>
      %cst_73 = arith.constant 2.44140625E-4 : f32
      %107 = vector.broadcast %cst_73 : f32 to vector<32x1xf32>
      %108 = arith.mulf %106, %107 : vector<32x1xf32>
      %c0_74 = arith.constant 0 : index
      %c0_75 = arith.constant 0 : index
      %109 = vector.load %arg3[%c0_74, %c0_75] : memref<5x32xf32, #tpu.memory_space<vmem>>, vector<5x32xf32>
      %cst_76 = arith.constant dense<0.000000e+00> : vector<5x1xf32>
      %110 = tpu.matmul %109, %108, %cst_76 {dimension_numbers = #tpu.dot_dimension_numbers<[1], [0], [0], [1], [0, 0, 1, 1], [], []>} : vector<5x32xf32>, vector<32x1xf32>, vector<5x1xf32> -> vector<5x1xf32>
      %c0_77 = arith.constant 0 : index
      %c0_78 = arith.constant 0 : index
      %111 = vector.load %arg4[%c0_77, %c0_78] : memref<5x1xf32, #tpu.memory_space<vmem>>, vector<5x1xf32>
      %112 = arith.addf %110, %111 : vector<5x1xf32>
      %cst_79 = arith.constant dense<0xFF800000> : vector<1xf32>
      %113 = vector.multi_reduction <maximumf>, %112, %cst_79 [0] : vector<5x1xf32> to vector<1xf32>
      %114 = vector.shape_cast %113 : vector<1xf32> to vector<1x1xf32>
      %115 = vector.broadcast %114 : vector<1x1xf32> to vector<5x1xf32>
      %116 = arith.subf %112, %115 : vector<5x1xf32>
      %117 = math.exp %116 : vector<5x1xf32>
      %cst_80 = arith.constant dense<0.000000e+00> : vector<1xf32>
      %118 = vector.multi_reduction <add>, %117, %cst_80 [0] : vector<5x1xf32> to vector<1xf32>
      %119 = vector.shape_cast %118 : vector<1xf32> to vector<1x1xf32>
      %120 = vector.broadcast %119 : vector<1x1xf32> to vector<5x1xf32>
      %121 = arith.divf %117, %120 : vector<5x1xf32>
      %c0_81 = arith.constant 0 : index
      %c0_82 = arith.constant 0 : index
      %c0_83 = arith.constant 0 : index
      %122 = vector.load %arg5[%c0_81, %c0_82, %c0_83] : memref<1x5x1xf32, #tpu.memory_space<vmem>>, vector<1x5x1xf32>
      %123 = vector.shape_cast %122 : vector<1x5x1xf32> to vector<5x1xf32>
      %124 = vector.shape_cast %121 : vector<5x1xf32> to vector<1x5x1xf32>
      tpu.vector_store %arg5[%c0_81, %c0_82, %c0_83], %124 {strides = array<i32>} : memref<1x5x1xf32, #tpu.memory_space<vmem>>, vector<1x5x1xf32>,
    } else {
    }
    return
  }
  func.func @transform_0(%arg0: i32, %arg1: i32) -> (i32, i32, i32) {
    %c0_i32 = arith.constant 0 : i32
    %c0_i32_0 = arith.constant 0 : i32
    return %arg0, %c0_i32, %arg1 : i32, i32, i32
  }
  func.func @transform_1(%arg0: i32, %arg1: i32) -> (i32, i32) {
    %c0_i32 = arith.constant 0 : i32
    %c0_i32_0 = arith.constant 0 : i32
    %c0_i32_1 = arith.constant 0 : i32
    return %c0_i32, %c0_i32_0 : i32, i32
  }
  func.func @transform_2(%arg0: i32, %arg1: i32) -> (i32, i32) {
    %c0_i32 = arith.constant 0 : i32
    %c0_i32_0 = arith.constant 0 : i32
    %c0_i32_1 = arith.constant 0 : i32
    return %c0_i32, %c0_i32_0 : i32, i32
  }
  func.func @transform_3(%arg0: i32, %arg1: i32) -> (i32, i32, i32) {
    %c0_i32 = arith.constant 0 : i32
    %c0_i32_0 = arith.constant 0 : i32
    %c0_i32_1 = arith.constant 0 : i32
    return %arg0, %c0_i32, %c0_i32_0 : i32, i32, i32
  }
}

</mosaic_0001>

<llo_original>
// kernel: tpu_custom_call.1
$region0: #{tpu_custom_call.1}
  #allocation0 [shape = 'u32[]', space=smem, size = 0x4, offset = 0x4, fixed_abs, tag = 'smem constant byte address 0x4 - core index']
  #allocation1 [shape = 'u32[144,128]{1,0:T(1,128)}', space=vmem, size = 0x12000, scoped, tag = 'internal scratch']
  #allocation2 [shape = 'f32[32,128]{1,0:T(8,128)}', space=vmem, size = 0x4000, scoped, tag = 'scratch operand']
  %s0 = inlined_call_operand.hbm [shape: f32[2,32,4096], index: 0, kind: input, shape index: {}]
  %s1 = inlined_call_operand.vmem [shape: f32[5,32], index: 1, kind: input, shape index: {}]
  %s2 = inlined_call_operand.vmem [shape: f32[5,1], index: 2, kind: input, shape index: {}]
  %s3 = inlined_call_operand.vmem [shape: f32[2,5,1], index: 3, kind: output, shape index: {}]
  %s4 = sld [smem:[#allocation0]]
  $region57: #{tpu_custom_call.1} parent=0
    _
  %s6 = ssub.s32 1, %s4
  %s7 = scalar_select 0, %s6, %s4
  $region1: #{tpu_custom_call.1} parent=0
    #allocation3 [shape = 'u8[1048576]{0}', space=vmem, size = 0x100000, scoped, tag = 'input window, operand 0']
    #allocation4 [shape = 's32[2]{0}', space=sflag, size = 0x8, scoped, tag = 'scoped memory for tpu_custom_call.1']
    %8 = vsyncpa [#allocation4], 0
    %s9 = scalar_lea.sflag [#allocation4], 1
    %10 = vsyncpa %s9, 0
    loop: start=0, step=1, limit=4
    $region2: #{tpu_custom_call.1} parent=1 // loop_pre_header
      _
    $region3: #{tpu_custom_call.1} parent=1 // loop_header
      %s12 = sphi 0, %s16
      %p13 = scmp.ge.s32.totalorder %s12, 4
      %s19 = sphi 0, %s31
      %s20 = sphi 0, %s27
      %s21 = sphi 0, %s19
      %s22 = sphi 0, %s20
      %s23 = sphi 0, %s21
      %s24 = sphi 0, %s22
      %s36 = sphi 0, %s38
      %s39 = sphi 0, %s36
      %s40 = sphi 0, %s39
      %s56 = sphi 0, %s40
      %s60 = sphi 0, %s60
      %s62 = sphi 0, %s60
      %s63 = sphi 0, %s62
      %s77 = sphi 0, %s63
      %s81 = sphi 0, %s81
      %s83 = sphi 0, %s81
      %s84 = sphi 0, %s83
      %s98 = sphi 0, %s84
      %s104 = sphi 0, %s106
      %s107 = sphi 0, %s104
      %s108 = sphi 0, %s107
      %s124 = sphi 0, %s108
    $region4: #{tpu_custom_call.1} parent=1 // loop_header_branch
      %15 = sbr.rel (%p13) target = $region8
    $region5: #{tpu_custom_call.1} parent=1 // loop_body
      %s17 = ssub.s32 %s12, 1
      %s18 = ssub.s32 %s12, 2
      %s25 = sadd.s32 1, %s20
      %p26 = scmp.ge.s32.totalorder %s25, 1
      %s27 = scalar_select %p26, 0, %s25
      %s28 = sadd.s32 1, %s19
      %s29 = scalar_select %p26, %s28, %s19
      %p30 = scmp.ge.s32.totalorder %s29, 2
      %s31 = scalar_select %p30, 0, %s29
      %s32 = ssub.s32 %s19, %s31
      %s33 = ssub.s32 %s20, %s27
      %s34 = sor.u32 %s32, %s33
      %p35 = scmp.eq.s32.totalorder %s34, 0
      %s37 = sadd.s32 %s36, 1
      %s38 = scalar_select %p35, %s36, %s37
      %p41 = pneg %p35
      %p42 = scmp.eq.s32.totalorder %s12, 1
      %p43 = por %p41, %p42
      %p44 = scmp.ne.s32.totalorder %s36, %s39
      %p45 = scmp.eq.s32.totalorder %s12, 0
      %p46 = por %p44, %p45
      %p47 = scmp.ne.s32.totalorder %s36, %s39
      %p48 = scmp.eq.s32.totalorder %s17, 1
      %p49 = por %p47, %p48
      %p50 = scmp.ne.s32.totalorder %s39, %s40
      %p51 = scmp.eq.s32.totalorder %s17, 0
      %p52 = por %p50, %p51
      %p53 = scmp.ne.s32.totalorder %s39, %s40
      %p54 = scmp.eq.s32.totalorder %s18, 1
      %p55 = por %p53, %p54
      %p57 = scmp.ne.s32.totalorder %s40, %s56
      %p58 = scmp.eq.s32.totalorder %s18, 0
      %p59 = por %p57, %p58
      %s61 = sadd.s32 %s60, 1
      %p64 = scmp.eq.s32.totalorder %s12, 1
      %p65 = scmp.ne.s32.totalorder %s60, %s62
      %p66 = scmp.eq.s32.totalorder %s12, 0
      %p67 = por %p65, %p66
      %p68 = scmp.ne.s32.totalorder %s60, %s62
      %p69 = scmp.eq.s32.totalorder %s17, 1
      %p70 = por %p68, %p69
      %p71 = scmp.ne.s32.totalorder %s62, %s63
      %p72 = scmp.eq.s32.totalorder %s17, 0
      %p73 = por %p71, %p72
      %p74 = scmp.ne.s32.totalorder %s62, %s63
      %p75 = scmp.eq.s32.totalorder %s18, 1
      %p76 = por %p74, %p75
      %p78 = scmp.ne.s32.totalorder %s63, %s77
      %p79 = scmp.eq.s32.totalorder %s18, 0
      %p80 = por %p78, %p79
      %s82 = sadd.s32 %s81, 1
      %p85 = scmp.eq.s32.totalorder %s12, 1
      %p86 = scmp.ne.s32.totalorder %s81, %s83
      %p87 = scmp.eq.s32.totalorder %s12, 0
      %p88 = por %p86, %p87
      %p89 = scmp.ne.s32.totalorder %s81, %s83
      %p90 = scmp.eq.s32.totalorder %s17, 1
      %p91 = por %p89, %p90
      %p92 = scmp.ne.s32.totalorder %s83, %s84
      %p93 = scmp.eq.s32.totalorder %s17, 0
      %p94 = por %p92, %p93
      %p95 = scmp.ne.s32.totalorder %s83, %s84
      %p96 = scmp.eq.s32.totalorder %s18, 1
      %p97 = por %p95, %p96
      %p99 = scmp.ne.s32.totalorder %s84, %s98
      %p100 = scmp.eq.s32.totalorder %s18, 0
      %p101 = por %p99, %p100
      %s102 = ssub.s32 %s19, %s31
      %p103 = scmp.eq.s32.totalorder %s102, 0
      %s105 = sadd.s32 %s104, 1
      %s106 = scalar_select %p103, %s104, %s105
      %p109 = pneg %p103
      %p110 = scmp.eq.s32.totalorder %s12, 1
      %p111 = por %p109, %p110
      %p112 = scmp.ne.s32.totalorder %s104, %s107
      %p113 = scmp.eq.s32.totalorder %s12, 0
      %p114 = por %p112, %p113
      %p115 = scmp.ne.s32.totalorder %s104, %s107
      %p116 = scmp.eq.s32.totalorder %s17, 1
      %p117 = por %p115, %p116
      %p118 = scmp.ne.s32.totalorder %s107, %s108
      %p119 = scmp.eq.s32.totalorder %s17, 0
      %p120 = por %p118, %p119
      %p121 = scmp.ne.s32.totalorder %s107, %s108
      %p122 = scmp.eq.s32.totalorder %s18, 1
      %p123 = por %p121, %p122
      %p125 = scmp.ne.s32.totalorder %s108, %s124
      %p126 = scmp.eq.s32.totalorder %s18, 0
      %p127 = por %p125, %p126
      %p128 = scmp.le.s32.totalorder 1, %s12
      %p129 = scmp.lt.s32.totalorder %s12, 3
      %p130 = pnand %p128, %p129
      %p131 = pneg %p130
      // Predicated region
      $region9: #{tpu_custom_call.1} parent=5 // pred_check
        _
      $region10: #{tpu_custom_call.1} parent=5 // pred_check_branch
        %133 = sbr.rel (%p130) target = $region12
      $region11: #{tpu_custom_call.1} parent=5 // pred_region
        %s134 = ssub.s32 %s12, 1
        // Predicated region
        $region13: #{tpu_custom_call.1} parent=11 // pred_check
          %p135 = pneg %p73
        $region14: #{tpu_custom_call.1} parent=11 // pred_check_branch
          %137 = sbr.rel (%p135) target = $region16
        $region15: #{tpu_custom_call.1} parent=11 // pred_region
          _
        $region16: #{tpu_custom_call.1} parent=11 // pred_fallthru
          _
        // Predicated region
        $region17: #{tpu_custom_call.1} parent=11 // pred_check
          %p138 = pneg %p94
        $region18: #{tpu_custom_call.1} parent=11 // pred_check_branch
          %140 = sbr.rel (%p138) target = $region20
        $region19: #{tpu_custom_call.1} parent=11 // pred_region
          _
        $region20: #{tpu_custom_call.1} parent=11 // pred_fallthru
          _
      $region12: #{tpu_custom_call.1} parent=5 // pred_fallthru
        _
      %p141 = scmp.lt.s32.totalorder %s12, 2
      // Predicated region
      $region21: #{tpu_custom_call.1} parent=5 // pred_check
        %p142 = pneg %p141
      $region22: #{tpu_custom_call.1} parent=5 // pred_check_branch
        %144 = sbr.rel (%p142) target = $region24
      $region23: #{tpu_custom_call.1} parent=5 // pred_region
        // Predicated region
        $region25: #{tpu_custom_call.1} parent=23 // pred_check
          %p145 = pneg %p46
        $region26: #{tpu_custom_call.1} parent=23 // pred_check_branch
          %147 = sbr.rel (%p145) target = $region28
        $region27: #{tpu_custom_call.1} parent=23 // pred_region
          %s148 = sand.u32 %s36, 1
          %s149 = scalar_lea.sflag [#allocation4], %s148
          %s150 = sand.u32 %s36, 1
          %s151 = smul.addr %s150, 1024
          %s152 = scalar_lea.vmem [#allocation3], %s151
          %s153 = smul.u32 32, %s20
          %s155 = ssub.s32 16384, 16384
          %156 = vsyncadd %s149, %s155
          %s157 = smul.addr %s19, 128
          %s158 = sadd.s32 %s153, %s157
          %s159 = smul.addr %s158, 128
          %s160 = scalar_lea.hbm %s0, %s159
          %s161 = sshll.u32 %s152, 4
          %s162 = int_to_ptr.vmem [resolvable:$true] %s161
          %167 = dma.hbm_to_vmem [thread:$0]  %s160, 16384, %s162, %s149, 4096, 4096, 256
        $region28: #{tpu_custom_call.1} parent=23 // pred_fallthru
          _
      $region24: #{tpu_custom_call.1} parent=5 // pred_fallthru
        _
      %p168 = scmp.le.s32.totalorder 1, %s12
      %p169 = scmp.lt.s32.totalorder %s12, 3
      %p170 = pnand %p168, %p169
      %p171 = pneg %p170
      // Predicated region
      $region29: #{tpu_custom_call.1} parent=5 // pred_check
        _
      $region30: #{tpu_custom_call.1} parent=5 // pred_check_branch
        %173 = sbr.rel (%p170) target = $region32
      $region31: #{tpu_custom_call.1} parent=5 // pred_region
        %s174 = ssub.s32 %s12, 1
        %s175 = sand.u32 %s39, 1
        %s176 = scalar_lea.sflag [#allocation4], %s175
        %s177 = sand.u32 %s39, 1
        %s178 = smul.addr %s177, 1024
        %s179 = scalar_lea.vmem [#allocation3], %s178
        // Predicated region
        $region33: #{tpu_custom_call.1} parent=31 // pred_check
          %p180 = pneg %p52
        $region34: #{tpu_custom_call.1} parent=31 // pred_check_branch
          %182 = sbr.rel (%p180) target = $region36
        $region35: #{tpu_custom_call.1} parent=31 // pred_region
          %183 = dma.done %s176, 16384
        $region36: #{tpu_custom_call.1} parent=31 // pred_fallthru
          _
        %s184 = sand.u32 %s39, 1
        %s185 = scalar_lea.sflag [#allocation4], %s184
        %s186 = sand.u32 %s39, 1
        %s187 = smul.addr %s186, 1024
        %s188 = scalar_lea.vmem [#allocation3], %s187
        %p189 = pneg %p52
        %p190 = pneg %p49
        %p191 = pneg %p73
        %p192 = pneg %p70
        %p193 = pneg %p94
        %p194 = pneg %p91
        %p195 = pneg %p120
        %p196 = pneg %p117
        %p197 = scmp.lt.s32.totalorder %s21, 1
        %s198 = scalar_select %p197, %s21, 1
        %s199 = smul.addr %s198, 8
        %s200 = scalar_lea.vmem %s3, %s199
        %s201 = smul.u32 32, %s22
        %p202 = scmp.lt.s32.totalorder %s21, 1
        %s203 = scalar_select %p202, %s21, 1
        %s204 = smul.addr %s203, 8
        %s205 = scalar_lea.vmem %s3, %s204
        %p206 = scmp.eq.s32.totalorder %s22, 0
        // Predicated region
        $region37: #{tpu_custom_call.1} parent=31 // pred_check
          %p207 = pneg %p206
        $region38: #{tpu_custom_call.1} parent=31 // pred_check_branch
          %209 = sbr.rel (%p207) target = $region40
        $region39: #{tpu_custom_call.1} parent=31 // pred_region
          %210 = vst [vmem:[#allocation2] sm:$0xff] 0.0
          %211 = vst [vmem:[#allocation2 + $0x8] sm:$0xff] 0.0
          %212 = vst [vmem:[#allocation2 + $0x10] sm:$0xff] 0.0
          %213 = vst [vmem:[#allocation2 + $0x18] sm:$0xff] 0.0
        $region40: #{tpu_custom_call.1} parent=31 // pred_fallthru
          _
        %v214 = vld [vmem:[%s179] sm:$0xff]
        %v215 = vld [vmem:[%s179 + $0x100] sm:$0xff]
        %v216 = vld [vmem:[%s179 + $0x200] sm:$0xff]
        %v217 = vld [vmem:[%s179 + $0x300] sm:$0xff]
        %v218 = vld [vmem:[%s179 + $0x8] sm:$0xff]
        %v219 = vld [vmem:[%s179 + $0x108] sm:$0xff]
        %v220 = vld [vmem:[%s179 + $0x208] sm:$0xff]
        %v221 = vld [vmem:[%s179 + $0x308] sm:$0xff]
        %v222 = vadd.f32 %v214, %v218
        %v223 = vadd.f32 %v215, %v219
        %v224 = vadd.f32 %v216, %v220
        %v225 = vadd.f32 %v217, %v221
        %v226 = vld [vmem:[%s179 + $0x10] sm:$0xff]
        %v227 = vld [vmem:[%s179 + $0x110] sm:$0xff]
        %v228 = vld [vmem:[%s179 + $0x210] sm:$0xff]
        %v229 = vld [vmem:[%s179 + $0x310] sm:$0xff]
        %v230 = vadd.f32 %v222, %v226
        %v231 = vadd.f32 %v223, %v227
        %v232 = vadd.f32 %v224, %v228
        %v233 = vadd.f32 %v225, %v229
        %v234 = vld [vmem:[%s179 + $0x18] sm:$0xff]
        %v235 = vld [vmem:[%s179 + $0x118] sm:$0xff]
        %v236 = vld [vmem:[%s179 + $0x218] sm:$0xff]
        %v237 = vld [vmem:[%s179 + $0x318] sm:$0xff]
        %v238 = vadd.f32 %v230, %v234
        %v239 = vadd.f32 %v231, %v235
        %v240 = vadd.f32 %v232, %v236
        %v241 = vadd.f32 %v233, %v237
        %v242 = vld [vmem:[%s179 + $0x20] sm:$0xff]
        %v243 = vld [vmem:[%s179 + $0x120] sm:$0xff]
        %v244 = vld [vmem:[%s179 + $0x220] sm:$0xff]
        %v245 = vld [vmem:[%s179 + $0x320] sm:$0xff]
        %v246 = vadd.f32 %v238, %v242
        %v247 = vadd.f32 %v239, %v243
        %v248 = vadd.f32 %v240, %v244
        %v249 = vadd.f32 %v241, %v245
        %v250 = vld [vmem:[%s179 + $0x28] sm:$0xff]
        %v251 = vld [vmem:[%s179 + $0x128] sm:$0xff]
        %v252 = vld [vmem:[%s179 + $0x228] sm:$0xff]
        %v253 = vld [vmem:[%s179 + $0x328] sm:$0xff]
        %v254 = vadd.f32 %v246, %v250
        %v255 = vadd.f32 %v247, %v251
        %v256 = vadd.f32 %v248, %v252
        %v257 = vadd.f32 %v249, %v253
        %v258 = vld [vmem:[%s179 + $0x30] sm:$0xff]
        %v259 = vld [vmem:[%s179 + $0x130] sm:$0xff]
        %v260 = vld [vmem:[%s179 + $0x230] sm:$0xff]
        %v261 = vld [vmem:[%s179 + $0x330] sm:$0xff]
        %v262 = vadd.f32 %v254, %v258
        %v263 = vadd.f32 %v255, %v259
        %v264 = vadd.f32 %v256, %v260
        %v265 = vadd.f32 %v257, %v261
        %v266 = vld [vmem:[%s179 + $0x38] sm:$0xff]
        %v267 = vld [vmem:[%s179 + $0x138] sm:$0xff]
        %v268 = vld [vmem:[%s179 + $0x238] sm:$0xff]
        %v269 = vld [vmem:[%s179 + $0x338] sm:$0xff]
        %v270 = vadd.f32 %v262, %v266
        %v271 = vadd.f32 %v263, %v267
        %v272 = vadd.f32 %v264, %v268
        %v273 = vadd.f32 %v265, %v269
        %v274 = vld [vmem:[%s179 + $0x40] sm:$0xff]
        %v275 = vld [vmem:[%s179 + $0x140] sm:$0xff]
        %v276 = vld [vmem:[%s179 + $0x240] sm:$0xff]
        %v277 = vld [vmem:[%s179 + $0x340] sm:$0xff]
        %v278 = vadd.f32 %v270, %v274
        %v279 = vadd.f32 %v271, %v275
        %v280 = vadd.f32 %v272, %v276
        %v281 = vadd.f32 %v273, %v277
        %v282 = vld [vmem:[%s179 + $0x48] sm:$0xff]
        %v283 = vld [vmem:[%s179 + $0x148] sm:$0xff]
        %v284 = vld [vmem:[%s179 + $0x248] sm:$0xff]
        %v285 = vld [vmem:[%s179 + $0x348] sm:$0xff]
        %v286 = vadd.f32 %v278, %v282
        %v287 = vadd.f32 %v279, %v283
        %v288 = vadd.f32 %v280, %v284
        %v289 = vadd.f32 %v281, %v285
        %v290 = vld [vmem:[%s179 + $0x50] sm:$0xff]
        %v291 = vld [vmem:[%s179 + $0x150] sm:$0xff]
        %v292 = vld [vmem:[%s179 + $0x250] sm:$0xff]
        %v293 = vld [vmem:[%s179 + $0x350] sm:$0xff]
        %v294 = vadd.f32 %v286, %v290
        %v295 = vadd.f32 %v287, %v291
        %v296 = vadd.f32 %v288, %v292
        %v297 = vadd.f32 %v289, %v293
        %v298 = vld [vmem:[%s179 + $0x58] sm:$0xff]
        %v299 = vld [vmem:[%s179 + $0x158] sm:$0xff]
        %v300 = vld [vmem:[%s179 + $0x258] sm:$0xff]
        %v301 = vld [vmem:[%s179 + $0x358] sm:$0xff]
        %v302 = vadd.f32 %v294, %v298
        %v303 = vadd.f32 %v295, %v299
        %v304 = vadd.f32 %v296, %v300
        %v305 = vadd.f32 %v297, %v301
        %v306 = vld [vmem:[%s179 + $0x60] sm:$0xff]
        %v307 = vld [vmem:[%s179 + $0x160] sm:$0xff]
        %v308 = vld [vmem:[%s179 + $0x260] sm:$0xff]
        %v309 = vld [vmem:[%s179 + $0x360] sm:$0xff]
        %v310 = vadd.f32 %v302, %v306
        %v311 = vadd.f32 %v303, %v307
        %v312 = vadd.f32 %v304, %v308
        %v313 = vadd.f32 %v305, %v309
        %v314 = vld [vmem:[%s179 + $0x68] sm:$0xff]
        %v315 = vld [vmem:[%s179 + $0x168] sm:$0xff]
        %v316 = vld [vmem:[%s179 + $0x268] sm:$0xff]
        %v317 = vld [vmem:[%s179 + $0x368] sm:$0xff]
        %v318 = vadd.f32 %v310, %v314
        %v319 = vadd.f32 %v311, %v315
        %v320 = vadd.f32 %v312, %v316
        %v321 = vadd.f32 %v313, %v317
        %v322 = vld [vmem:[%s179 + $0x70] sm:$0xff]
        %v323 = vld [vmem:[%s179 + $0x170] sm:$0xff]
        %v324 = vld [vmem:[%s179 + $0x270] sm:$0xff]
        %v325 = vld [vmem:[%s179 + $0x370] sm:$0xff]
        %v326 = vadd.f32 %v318, %v322
        %v327 = vadd.f32 %v319, %v323
        %v328 = vadd.f32 %v320, %v324
        %v329 = vadd.f32 %v321, %v325
        %v330 = vld [vmem:[%s179 + $0x78] sm:$0xff]
        %v331 = vld [vmem:[%s179 + $0x178] sm:$0xff]
        %v332 = vld [vmem:[%s179 + $0x278] sm:$0xff]
        %v333 = vld [vmem:[%s179 + $0x378] sm:$0xff]
        %v334 = vadd.f32 %v326, %v330
        %v335 = vadd.f32 %v327, %v331
        %v336 = vadd.f32 %v328, %v332
        %v337 = vadd.f32 %v329, %v333
        %v338 = vld [vmem:[%s179 + $0x80] sm:$0xff]
        %v339 = vld [vmem:[%s179 + $0x180] sm:$0xff]
        %v340 = vld [vmem:[%s179 + $0x280] sm:$0xff]
        %v341 = vld [vmem:[%s179 + $0x380] sm:$0xff]
        %v342 = vadd.f32 %v334, %v338
        %v343 = vadd.f32 %v335, %v339
        %v344 = vadd.f32 %v336, %v340
        %v345 = vadd.f32 %v337, %v341
        %v346 = vld [vmem:[%s179 + $0x88] sm:$0xff]
        %v347 = vld [vmem:[%s179 + $0x188] sm:$0xff]
        %v348 = vld [vmem:[%s179 + $0x288] sm:$0xff]
        %v349 = vld [vmem:[%s179 + $0x388] sm:$0xff]
        %v350 = vadd.f32 %v342, %v346
        %v351 = vadd.f32 %v343, %v347
        %v352 = vadd.f32 %v344, %v348
        %v353 = vadd.f32 %v345, %v349
        %v354 = vld [vmem:[%s179 + $0x90] sm:$0xff]
        %v355 = vld [vmem:[%s179 + $0x190] sm:$0xff]
        %v356 = vld [vmem:[%s179 + $0x290] sm:$0xff]
        %v357 = vld [vmem:[%s179 + $0x390] sm:$0xff]
        %v358 = vadd.f32 %v350, %v354
        %v359 = vadd.f32 %v351, %v355
        %v360 = vadd.f32 %v352, %v356
        %v361 = vadd.f32 %v353, %v357
        %v362 = vld [vmem:[%s179 + $0x98] sm:$0xff]
        %v363 = vld [vmem:[%s179 + $0x198] sm:$0xff]
        %v364 = vld [vmem:[%s179 + $0x298] sm:$0xff]
        %v365 = vld [vmem:[%s179 + $0x398] sm:$0xff]
        %v366 = vadd.f32 %v358, %v362
        %v367 = vadd.f32 %v359, %v363
        %v368 = vadd.f32 %v360, %v364
        %v369 = vadd.f32 %v361, %v365
        %v370 = vld [vmem:[%s179 + $0xa0] sm:$0xff]
        %v371 = vld [vmem:[%s179 + $0x1a0] sm:$0xff]
        %v372 = vld [vmem:[%s179 + $0x2a0] sm:$0xff]
        %v373 = vld [vmem:[%s179 + $0x3a0] sm:$0xff]
        %v374 = vadd.f32 %v366, %v370
        %v375 = vadd.f32 %v367, %v371
        %v376 = vadd.f32 %v368, %v372
        %v377 = vadd.f32 %v369, %v373
        %v378 = vld [vmem:[%s179 + $0xa8] sm:$0xff]
        %v379 = vld [vmem:[%s179 + $0x1a8] sm:$0xff]
        %v380 = vld [vmem:[%s179 + $0x2a8] sm:$0xff]
        %v381 = vld [vmem:[%s179 + $0x3a8] sm:$0xff]
        %v382 = vadd.f32 %v374, %v378
        %v383 = vadd.f32 %v375, %v379
        %v384 = vadd.f32 %v376, %v380
        %v385 = vadd.f32 %v377, %v381
        %v386 = vld [vmem:[%s179 + $0xb0] sm:$0xff]
        %v387 = vld [vmem:[%s179 + $0x1b0] sm:$0xff]
        %v388 = vld [vmem:[%s179 + $0x2b0] sm:$0xff]
        %v389 = vld [vmem:[%s179 + $0x3b0] sm:$0xff]
        %v390 = vadd.f32 %v382, %v386
        %v391 = vadd.f32 %v383, %v387
        %v392 = vadd.f32 %v384, %v388
        %v393 = vadd.f32 %v385, %v389
        %v394 = vld [vmem:[%s179 + $0xb8] sm:$0xff]
        %v395 = vld [vmem:[%s179 + $0x1b8] sm:$0xff]
        %v396 = vld [vmem:[%s179 + $0x2b8] sm:$0xff]
        %v397 = vld [vmem:[%s179 + $0x3b8] sm:$0xff]
        %v398 = vadd.f32 %v390, %v394
        %v399 = vadd.f32 %v391, %v395
        %v400 = vadd.f32 %v392, %v396
        %v401 = vadd.f32 %v393, %v397
        %v402 = vld [vmem:[%s179 + $0xc0] sm:$0xff]
        %v403 = vld [vmem:[%s179 + $0x1c0] sm:$0xff]
        %v404 = vld [vmem:[%s179 + $0x2c0] sm:$0xff]
        %v405 = vld [vmem:[%s179 + $0x3c0] sm:$0xff]
        %v406 = vadd.f32 %v398, %v402
        %v407 = vadd.f32 %v399, %v403
        %v408 = vadd.f32 %v400, %v404
        %v409 = vadd.f32 %v401, %v405
        %v410 = vld [vmem:[%s179 + $0xc8] sm:$0xff]
        %v411 = vld [vmem:[%s179 + $0x1c8] sm:$0xff]
        %v412 = vld [vmem:[%s179 + $0x2c8] sm:$0xff]
        %v413 = vld [vmem:[%s179 + $0x3c8] sm:$0xff]
        %v414 = vadd.f32 %v406, %v410
        %v415 = vadd.f32 %v407, %v411
        %v416 = vadd.f32 %v408, %v412
        %v417 = vadd.f32 %v409, %v413
        %v418 = vld [vmem:[%s179 + $0xd0] sm:$0xff]
        %v419 = vld [vmem:[%s179 + $0x1d0] sm:$0xff]
        %v420 = vld [vmem:[%s179 + $0x2d0] sm:$0xff]
        %v421 = vld [vmem:[%s179 + $0x3d0] sm:$0xff]
        %v422 = vadd.f32 %v414, %v418
        %v423 = vadd.f32 %v415, %v419
        %v424 = vadd.f32 %v416, %v420
        %v425 = vadd.f32 %v417, %v421
        %v426 = vld [vmem:[%s179 + $0xd8] sm:$0xff]
        %v427 = vld [vmem:[%s179 + $0x1d8] sm:$0xff]
        %v428 = vld [vmem:[%s179 + $0x2d8] sm:$0xff]
        %v429 = vld [vmem:[%s179 + $0x3d8] sm:$0xff]
        %v430 = vadd.f32 %v422, %v426
        %v431 = vadd.f32 %v423, %v427
        %v432 = vadd.f32 %v424, %v428
        %v433 = vadd.f32 %v425, %v429
        %v434 = vld [vmem:[%s179 + $0xe0] sm:$0xff]
        %v435 = vld [vmem:[%s179 + $0x1e0] sm:$0xff]
        %v436 = vld [vmem:[%s179 + $0x2e0] sm:$0xff]
        %v437 = vld [vmem:[%s179 + $0x3e0] sm:$0xff]
        %v438 = vadd.f32 %v430, %v434
        %v439 = vadd.f32 %v431, %v435
        %v440 = vadd.f32 %v432, %v436
        %v441 = vadd.f32 %v433, %v437
        %v442 = vld [vmem:[%s179 + $0xe8] sm:$0xff]
        %v443 = vld [vmem:[%s179 + $0x1e8] sm:$0xff]
        %v444 = vld [vmem:[%s179 + $0x2e8] sm:$0xff]
        %v445 = vld [vmem:[%s179 + $0x3e8] sm:$0xff]
        %v446 = vadd.f32 %v438, %v442
        %v447 = vadd.f32 %v439, %v443
        %v448 = vadd.f32 %v440, %v444
        %v449 = vadd.f32 %v441, %v445
        %v450 = vld [vmem:[%s179 + $0xf0] sm:$0xff]
        %v451 = vld [vmem:[%s179 + $0x1f0] sm:$0xff]
        %v452 = vld [vmem:[%s179 + $0x2f0] sm:$0xff]
        %v453 = vld [vmem:[%s179 + $0x3f0] sm:$0xff]
        %v454 = vadd.f32 %v446, %v450
        %v455 = vadd.f32 %v447, %v451
        %v456 = vadd.f32 %v448, %v452
        %v457 = vadd.f32 %v449, %v453
        %v458 = vld [vmem:[%s179 + $0xf8] sm:$0xff]
        %v459 = vld [vmem:[%s179 + $0x1f8] sm:$0xff]
        %v460 = vld [vmem:[%s179 + $0x2f8] sm:$0xff]
        %v461 = vld [vmem:[%s179 + $0x3f8] sm:$0xff]
        %v462 = vadd.f32 %v454, %v458
        %v463 = vadd.f32 %v455, %v459
        %v464 = vadd.f32 %v456, %v460
        %v465 = vadd.f32 %v457, %v461
        %v466 = vld [vmem:[#allocation2] sm:$0xff]
        %v467 = vld [vmem:[#allocation2 + $0x8] sm:$0xff]
        %v468 = vld [vmem:[#allocation2 + $0x10] sm:$0xff]
        %v469 = vld [vmem:[#allocation2 + $0x18] sm:$0xff]
        %v470 = vadd.f32 %v466, %v462
        %v471 = vadd.f32 %v467, %v463
        %v472 = vadd.f32 %v468, %v464
        %v473 = vadd.f32 %v469, %v465
        %474 = vst [vmem:[#allocation2] sm:$0xff] %v470
        %475 = vst [vmem:[#allocation2 + $0x8] sm:$0xff] %v471
        %476 = vst [vmem:[#allocation2 + $0x10] sm:$0xff] %v472
        %477 = vst [vmem:[#allocation2 + $0x18] sm:$0xff] %v473
        // Predicated region
        $region41: #{tpu_custom_call.1} parent=31 // pred_check
          %p478 = pneg %p206
        $region42: #{tpu_custom_call.1} parent=31 // pred_check_branch
          %480 = sbr.rel (%p478) target = $region44
        $region43: #{tpu_custom_call.1} parent=31 // pred_region
          %v481 = vld [vmem:[#allocation2] sm:$0xff]
          %v482 = vld [vmem:[#allocation2 + $0x8] sm:$0xff]
          %v483 = vld [vmem:[#allocation2 + $0x10] sm:$0xff]
          %v484 = vld [vmem:[#allocation2 + $0x18] sm:$0xff]
          %485 = vadd.xlane.f32.xlu0 %v481
          %v486 = vpop.xlane.xlu0 %485
          %487 = vadd.xlane.f32.xlu0 %v482
          %v488 = vpop.xlane.xlu0 %487
          %489 = vadd.xlane.f32.xlu0 %v483
          %v490 = vpop.xlane.xlu0 %489
          %491 = vadd.xlane.f32.xlu0 %v484
          %v492 = vpop.xlane.xlu0 %491
          %v493 = vmul.f32 %v486, 0.00024414063
          %v494 = vmul.f32 %v488, 0.00024414063
          %v495 = vmul.f32 %v490, 0.00024414063
          %v496 = vmul.f32 %v492, 0.00024414063
          %v497 = vld [vmem:[%s1] sm:$0x1f]
          %v498 = vld [vmem:[%s2] sm:$0x1f]
          %vm499 = vcmask 261120
          %v501 = vsel %vm499, %v497, 0
          %503 = vmatprep.subr.mxu0 0.0
          %504 = vmatpush1.msra.mxu0 0.0
          %505 = vmatprep.subr.mxu0 0.0
          %506 = vmatpush1.msra.mxu0 0.0
          %507 = vmatprep.subr.mxu0 0.0
          %508 = vmatpush1.msra.mxu0 0.0
          %509 = vmatprep.subr.mxu0 0.0
          %510 = vmatpush1.msra.mxu0 0.0
          %511 = vmatprep.subr.mxu0 0.0
          %512 = vmatpush1.msra.mxu0 0.0
          %513 = vmatprep.subr.mxu0 0.0
          %514 = vmatpush1.msra.mxu0 0.0
          %515 = vmatprep.subr.mxu0 0.0
          %516 = vmatpush1.msra.mxu0 0.0
          %517 = vmatprep.subr.mxu0 0.0
          %518 = vmatpush1.msra.mxu0 0.0
          %519 = vmatprep.subr.mxu0 0.0
          %520 = vmatpush1.msra.mxu0 0.0
          %521 = vmatprep.subr.mxu0 0.0
          %522 = vmatpush1.msra.mxu0 0.0
          %523 = vmatprep.subr.mxu0 0.0
          %524 = vmatpush1.msra.mxu0 0.0
          %525 = vmatprep.subr.mxu0 0.0
          %526 = vmatpush1.msra.mxu0 0.0
          %527 = vmatprep.subr.mxu0 0.0
          %528 = vmatpush1.msra.mxu0 %v496
          %529 = vmatprep.subr.mxu0 0.0
          %530 = vmatpush1.msra.mxu0 %v495
          %531 = vmatprep.subr.mxu0 0.0
          %532 = vmatpush1.msra.mxu0 %v494
          %533 = vmatprep.subr.mxu0 0.0
          %534 = vmatpush1.msra.mxu0 %v493
          %535 = vmatprep.subr.mxu0 0.0
          %536 = vmatpush2.msra.mxu0 0.0
          %537 = vmatprep.subr.mxu0 0.0
          %538 = vmatpush2.msra.mxu0 0.0
          %539 = vmatprep.subr.mxu0 0.0
          %540 = vmatpush2.msra.mxu0 0.0
          %541 = vmatprep.subr.mxu0 0.0
          %542 = vmatpush2.msra.mxu0 0.0
          %543 = vmatprep.subr.mxu0 0.0
          %544 = vmatpush2.msra.mxu0 0.0
          %545 = vmatprep.subr.mxu0 0.0
          %546 = vmatpush2.msra.mxu0 0.0
          %547 = vmatprep.subr.mxu0 0.0
          %548 = vmatpush2.msra.mxu0 0.0
          %549 = vmatprep.subr.mxu0 0.0
          %550 = vmatpush2.msra.mxu0 0.0
          %551 = vmatprep.subr.mxu0 0.0
          %552 = vmatpush2.msra.mxu0 0.0
          %553 = vmatprep.subr.mxu0 0.0
          %554 = vmatpush2.msra.mxu0 0.0
          %555 = vmatprep.subr.mxu0 0.0
          %556 = vmatpush2.msra.mxu0 0.0
          %557 = vmatprep.subr.mxu0 0.0
          %558 = vmatpush2.msra.mxu0 0.0
          %559 = vmatprep.subr.mxu0 0.0
          %560 = vmatpush2.msra.mxu0 0.0
          %561 = vmatprep.subr.mxu0 0.0
          %562 = vmatpush2.msra.mxu0 0.0
          %563 = vmatprep.subr.mxu0 0.0
          %564 = vmatpush2.msra.mxu0 0.0
          %565 = vmatprep.subr.mxu0 0.0
          %566 = vmatpush2.msra.mxu0 0.0
          %567 = vmatprep.mubr.f32.mxu0 0.0
          %568 = vmatmul.mubr.f32.gmra.mxu0 %v501
          %v569 = vpop.f32.mrf.mxu0
          %v570 = vadd.f32 %v498, %v569
          %v571 = vpop.f32.mrf.mxu0
          %572 = vdwg.mxu0
          %vm573 = vcmask 4096
          %v574 = vsel %vm573, %v570, -inf
          %v575 = vrot.slane %v574, 4
          %v576 = vmax.f32 %v574, %v575
          %v577 = vrot.slane %v576, 2
          %v578 = vmax.f32 %v576, %v577
          %v579 = vrot.slane %v578, 1
          %v580 = vmax.f32 %v578, %v579
          %v581 = vsub.f32 %v570, %v580
          %v582 = vmul.f32 %v581, 1.442695
          %v583 = vpow.pop %v582
          %v584 = vsel %vm573, %v583, 0.0
          %v585 = vrot.slane %v584, 4
          %v586 = vadd.f32 %v584, %v585
          %v587 = vrot.slane %v586, 2
          %v588 = vadd.f32 %v586, %v587
          %v589 = vrot.slane %v588, 1
          %v590 = vadd.f32 %v588, %v589
          %v591 = vrcp.pop %v590
          %v592 = vmul.f32 %v583, %v591
          %593 = vst.msk [vmem:[%s205] sm:$0x1f] %vm573, %v592
        $region44: #{tpu_custom_call.1} parent=31 // pred_fallthru
          _
        %p594 = scmp.lt.s32.totalorder %s21, 1
        %s595 = scalar_select %p594, %s21, 1
        %s596 = smul.addr %s595, 8
        %s597 = scalar_lea.vmem %s3, %s596
        // Predicated region
        $region45: #{tpu_custom_call.1} parent=31 // pred_check
          %p598 = pneg %p117
        $region46: #{tpu_custom_call.1} parent=31 // pred_check_branch
          %600 = sbr.rel (%p598) target = $region48
        $region47: #{tpu_custom_call.1} parent=31 // pred_region
          _
        $region48: #{tpu_custom_call.1} parent=31 // pred_fallthru
          _
      $region32: #{tpu_custom_call.1} parent=5 // pred_fallthru
        _
      %p601 = scmp.le.s32.totalorder 2, %s12
      // Predicated region
      $region49: #{tpu_custom_call.1} parent=5 // pred_check
        %p602 = pneg %p601
      $region50: #{tpu_custom_call.1} parent=5 // pred_check_branch
        %604 = sbr.rel (%p602) target = $region52
      $region51: #{tpu_custom_call.1} parent=5 // pred_region
        %s605 = ssub.s32 %s12, 2
        // Predicated region
        $region53: #{tpu_custom_call.1} parent=51 // pred_check
          %p606 = pneg %p123
        $region54: #{tpu_custom_call.1} parent=51 // pred_check_branch
          %608 = sbr.rel (%p606) target = $region56
        $region55: #{tpu_custom_call.1} parent=51 // pred_region
          %p609 = scmp.lt.s32.totalorder %s23, 1
          %s610 = scalar_select %p609, %s23, 1
          %s611 = smul.addr %s610, 8
          %s612 = scalar_lea.vmem %s3, %s611
        $region56: #{tpu_custom_call.1} parent=51 // pred_fallthru
          _
      $region52: #{tpu_custom_call.1} parent=5 // pred_fallthru
        _
    $region6: #{tpu_custom_call.1} parent=1 // loop_footer
      %s16 = sadd.s32 1, %s12
    $region7: #{tpu_custom_call.1} parent=1 // loop_footer_branch
      %11 = sbr.rel target = $region3
    $region8: #{tpu_custom_call.1} parent=1 // loop_exit
      _
    %613 = vsyncpa [#allocation4], 1
    %s614 = scalar_lea.sflag [#allocation4], 1
    %615 = vsyncpa %s614, 1

</llo_original>
